<compile_context>
chip_gen: v5e
topology: v5e:2x2
jax: 0.10.0
libtpu: 0.0.40
codegen_flags: <defaults>
</compile_context>

<pallas_src>
from functools import partial

import jax
import jax.numpy as jnp
from jax.experimental import pallas as pl
from jax.experimental.pallas import tpu as pltpu


# ----------------------------------------------------------------------------
# Pallas kernel
# ----------------------------------------------------------------------------
def _layernorm2d_kernel(x_ref, w_ref, b_ref, o_ref, *, eps):
    # x_ref / o_ref: (1, C, T)   w_ref / b_ref: (C, 1)
    x = x_ref[0].astype(jnp.float32)                      # (C, T)
    inv_c = 1.0 / x.shape[0]
    mean = jnp.sum(x, axis=0, keepdims=True) * inv_c      # (1, T)
    xc = x - mean
    var = jnp.sum(xc * xc, axis=0, keepdims=True) * inv_c  # (1, T)
    inv_std = jax.lax.rsqrt(var + eps)                     # EUP rsqrt
    y = xc * inv_std * w_ref[...] + b_ref[...]             # (C,1) lane-broadcast
    o_ref[0] = y.astype(o_ref.dtype)


def _pick_spatial_tile(hw, max_tile=2048):
    """Largest multiple-of-128 divisor of hw (capped), else full hw block."""
    if hw % 128 != 0:
        return hw
    t = min(hw, max_tile)
    t -= t % 128
    while t >= 128:
        if hw % t == 0:
            return t
        t -= 128
    return hw


def layernorm2d_pallas(x, weight, bias, eps=1e-6):
    """LayerNorm2d forward. x: (B, C, H, W); weight/bias: (C,)."""
    B, C, H, W = x.shape
    HW = H * W
    t = _pick_spatial_tile(HW)

    x3 = x.reshape(B, C, HW)          # contiguous reshape: no extra HBM pass
    w2 = weight.reshape(C, 1)         # tiny; done once per call
    b2 = bias.reshape(C, 1)

    out = pl.pallas_call(
        partial(_layernorm2d_kernel, eps=eps),
        out_shape=jax.ShapeDtypeStruct((B, C, HW), x.dtype),
        grid=(B, HW // t),
        in_specs=[
            pl.BlockSpec((1, C, t), lambda b, s: (b, 0, s)),
            pl.BlockSpec((C, 1), lambda b, s: (0, 0)),
            pl.BlockSpec((C, 1), lambda b, s: (0, 0)),
        ],
        out_specs=pl.BlockSpec((1, C, t), lambda b, s: (b, 0, s)),
        compiler_params=pltpu.CompilerParams(
            dimension_semantics=("parallel", "parallel")),
    )(x3, w2, b2)
    return out.reshape(B, C, H, W)


# ----------------------------------------------------------------------------
# Pure-JAX reference (mirrors the PyTorch forward exactly)
# ----------------------------------------------------------------------------
def layernorm2d_ref(x, weight, bias, eps=1e-6):
    u = jnp.mean(x, axis=1, keepdims=True)
    s = jnp.mean((x - u) ** 2, axis=1, keepdims=True)
    xn = (x - u) / jnp.sqrt(s + eps)
    return weight[None, :, None, None] * xn + bias[None, :, None, None]


# ----------------------------------------------------------------------------
# main
# ----------------------------------------------------------------------------
if __name__ == "__main__":
    key = jax.random.PRNGKey(0)
    eps = 1e-6

    # Case 1: lane-aligned spatial size (H*W multiple of 128).
    B, C, H, W = 2, 32, 16, 16
    k1, k2, k3, k4 = jax.random.split(key, 4)
    x = jax.random.normal(k1, (B, C, H, W), jnp.float32)
    weight = 1.0 + 0.1 * jax.random.normal(k2, (C,), jnp.float32)
    bias = 0.1 * jax.random.normal(k3, (C,), jnp.float32)

    out = jax.block_until_ready(layernorm2d_pallas(x, weight, bias, eps))
    ref = jax.block_until_ready(layernorm2d_ref(x, weight, bias, eps))
    assert out.shape == (B, C, H, W)
    assert jnp.allclose(out, ref, rtol=1e-4, atol=1e-4), "mismatch (aligned case)"

    # Case 2: unaligned spatial size (falls back to full-H*W block).
    B2, C2, H2, W2 = 2, 24, 7, 7
    x2 = jax.random.normal(k4, (B2, C2, H2, W2), jnp.float32)
    w2 = jnp.ones((C2,), jnp.float32)
    b2 = jnp.zeros((C2,), jnp.float32)
    out2 = jax.block_until_ready(layernorm2d_pallas(x2, w2, b2, eps))
    ref2 = jax.block_until_ready(layernorm2d_ref(x2, w2, b2, eps))
    assert jnp.allclose(out2, ref2, rtol=1e-4, atol=1e-4), "mismatch (unaligned case)"

    print("KERNEL_OK")
</pallas_src>

<mosaic_0001>
module attributes {stable_mosaic.version = 11 : i64} {
  func.func @_layernorm2d_kernel(%arg0: i32, %arg1: i32, %arg2: memref<1x32x256xf32, #tpu.memory_space<vmem>>, %arg3: memref<32x1xf32, #tpu.memory_space<vmem>>, %arg4: memref<32x1xf32, #tpu.memory_space<vmem>>, %arg5: memref<1x32x256xf32, #tpu.memory_space<vmem>>) attributes {dimension_semantics = [#tpu.dimension_semantics<parallel>, #tpu.dimension_semantics<parallel>], iteration_bounds = array<i64: 2, 1>, scalar_prefetch = 0 : i64, scratch_operands = 0 : i64, tpu.core_type = #tpu.core_type<tc>, window_params = [{transform_indices = @transform_0, window_bounds = array<i64: 1, 32, 256>}, {pipeline_mode = #tpu.pipeline_mode<synchronous>, transform_indices = @transform_1, window_bounds = array<i64: 32, 1>}, {pipeline_mode = #tpu.pipeline_mode<synchronous>, transform_indices = @transform_2, window_bounds = array<i64: 32, 1>}, {transform_indices = @transform_3, window_bounds = array<i64: 1, 32, 256>}]} {
    %c0 = arith.constant 0 : index
    %c0_0 = arith.constant 0 : index
    %c0_1 = arith.constant 0 : index
    %0 = vector.load %arg2[%c0, %c0_0, %c0_1] : memref<1x32x256xf32, #tpu.memory_space<vmem>>, vector<1x32x256xf32>
    %1 = vector.shape_cast %0 : vector<1x32x256xf32> to vector<32x256xf32>
    %cst = arith.constant dense<0.000000e+00> : vector<256xf32>
    %2 = vector.multi_reduction <add>, %1, %cst [0] : vector<32x256xf32> to vector<256xf32>
    %3 = vector.shape_cast %2 : vector<256xf32> to vector<1x256xf32>
    %cst_2 = arith.constant 3.125000e-02 : f32
    %4 = vector.broadcast %cst_2 : f32 to vector<1x256xf32>
    %5 = arith.mulf %3, %4 : vector<1x256xf32>
    %6 = vector.broadcast %5 : vector<1x256xf32> to vector<32x256xf32>
    %7 = arith.subf %1, %6 : vector<32x256xf32>
    %8 = arith.mulf %7, %7 : vector<32x256xf32>
    %cst_3 = arith.constant dense<0.000000e+00> : vector<256xf32>
    %9 = vector.multi_reduction <add>, %8, %cst_3 [0] : vector<32x256xf32> to vector<256xf32>
    %10 = vector.shape_cast %9 : vector<256xf32> to vector<1x256xf32>
    %cst_4 = arith.constant 3.125000e-02 : f32
    %11 = vector.broadcast %cst_4 : f32 to vector<1x256xf32>
    %12 = arith.mulf %10, %11 : vector<1x256xf32>
    %cst_5 = arith.constant 9.99999997E-7 : f32
    %13 = vector.broadcast %cst_5 : f32 to vector<1x256xf32>
    %14 = arith.addf %12, %13 : vector<1x256xf32>
    %15 = math.rsqrt %14 : vector<1x256xf32>
    %16 = vector.broadcast %15 : vector<1x256xf32> to vector<32x256xf32>
    %17 = arith.mulf %7, %16 : vector<32x256xf32>
    %c0_6 = arith.constant 0 : index
    %c0_7 = arith.constant 0 : index
    %18 = vector.load %arg3[%c0_6, %c0_7] : memref<32x1xf32, #tpu.memory_space<vmem>>, vector<32x1xf32>
    %19 = vector.broadcast %18 : vector<32x1xf32> to vector<32x256xf32>
    %20 = arith.mulf %17, %19 : vector<32x256xf32>
    %c0_8 = arith.constant 0 : index
    %c0_9 = arith.constant 0 : index
    %21 = vector.load %arg4[%c0_8, %c0_9] : memref<32x1xf32, #tpu.memory_space<vmem>>, vector<32x1xf32>
    %22 = vector.broadcast %21 : vector<32x1xf32> to vector<32x256xf32>
    %23 = arith.addf %20, %22 : vector<32x256xf32>
    %c0_10 = arith.constant 0 : index
    %c0_11 = arith.constant 0 : index
    %c0_12 = arith.constant 0 : index
    %24 = vector.load %arg5[%c0_10, %c0_11, %c0_12] : memref<1x32x256xf32, #tpu.memory_space<vmem>>, vector<1x32x256xf32>
    %25 = vector.shape_cast %24 : vector<1x32x256xf32> to vector<32x256xf32>
    %26 = vector.shape_cast %23 : vector<32x256xf32> to vector<1x32x256xf32>
    tpu.vector_store %arg5[%c0_10, %c0_11, %c0_12], %26 {strides = array<i32>} : memref<1x32x256xf32, #tpu.memory_space<vmem>>, vector<1x32x256xf32>,
    return
  }
  func.func @transform_0(%arg0: i32, %arg1: i32) -> (i32, i32, i32) {
    %c0_i32 = arith.constant 0 : i32
    %c0_i32_0 = arith.constant 0 : i32
    return %arg0, %c0_i32, %arg1 : i32, i32, i32
  }
  func.func @transform_1(%arg0: i32, %arg1: i32) -> (i32, i32) {
    %c0_i32 = arith.constant 0 : i32
    %c0_i32_0 = arith.constant 0 : i32
    %c0_i32_1 = arith.constant 0 : i32
    return %c0_i32, %c0_i32_0 : i32, i32
  }
  func.func @transform_2(%arg0: i32, %arg1: i32) -> (i32, i32) {
    %c0_i32 = arith.constant 0 : i32
    %c0_i32_0 = arith.constant 0 : i32
    %c0_i32_1 = arith.constant 0 : i32
    return %c0_i32, %c0_i32_0 : i32, i32
  }
  func.func @transform_3(%arg0: i32, %arg1: i32) -> (i32, i32, i32) {
    %c0_i32 = arith.constant 0 : i32
    %c0_i32_0 = arith.constant 0 : i32
    return %arg0, %c0_i32, %arg1 : i32, i32, i32
  }
}

</mosaic_0001>

<llo_original>
// kernel: tpu_custom_call.1
$region0: #{tpu_custom_call.1}
  #allocation0 [shape = 'u32[]', space=smem, size = 0x4, offset = 0x4, fixed_abs, tag = 'smem constant byte address 0x4 - core index']
  #allocation1 [shape = 'u32[72,128]{1,0:T(1,128)}', space=vmem, size = 0x9000, scoped, tag = 'internal scratch']
  %s0 = inlined_call_operand.hbm [shape: f32[2,32,256], index: 0, kind: input, shape index: {}]
  %s1 = inlined_call_operand.vmem [shape: f32[32,1], index: 1, kind: input, shape index: {}]
  %s2 = inlined_call_operand.vmem [shape: f32[32,1], index: 2, kind: input, shape index: {}]
  %s3 = inlined_call_operand.hbm [shape: f32[2,32,256], index: 3, kind: output, shape index: {}]
  %s4 = sld [smem:[#allocation0]]
  $region49: #{tpu_custom_call.1} parent=0
    _
  %s6 = ssub.s32 1, %s4
  %s7 = scalar_select 0, %s6, %s4
  $region1: #{tpu_custom_call.1} parent=0
    #allocation2 [shape = 'u8[65536]{0}', space=vmem, size = 0x10000, scoped, tag = 'input window, operand 0']
    #allocation3 [shape = 's32[2]{0}', space=sflag, size = 0x8, scoped, tag = 'scoped memory for tpu_custom_call.1']
    #allocation4 [shape = 's32[2]{0}', space=sflag, size = 0x8, scoped, tag = 'scoped memory for tpu_custom_call.1']
    #allocation5 [shape = 'u8[65536]{0}', space=vmem, size = 0x10000, scoped, tag = 'output window, operand 0']
    %8 = vsyncpa [#allocation3], 0
    %s9 = scalar_lea.sflag [#allocation3], 1
    %10 = vsyncpa %s9, 0
    %11 = vsyncpa [#allocation4], 0
    %s12 = scalar_lea.sflag [#allocation4], 1
    %13 = vsyncpa %s12, 0
    loop: start=0, step=1, limit=4
    $region2: #{tpu_custom_call.1} parent=1 // loop_pre_header
      _
    $region3: #{tpu_custom_call.1} parent=1 // loop_header
      %s15 = sphi 0, %s19
      %p16 = scmp.ge.s32.totalorder %s15, 4
      %s22 = sphi 0, %s34
      %s23 = sphi 0, %s30
      %s24 = sphi 0, %s22
      %s25 = sphi 0, %s23
      %s26 = sphi 0, %s24
      %s27 = sphi 0, %s25
      %s39 = sphi 0, %s41
      %s42 = sphi 0, %s39
      %s43 = sphi 0, %s42
      %s59 = sphi 0, %s43
      %s63 = sphi 0, %s63
      %s65 = sphi 0, %s63
      %s66 = sphi 0, %s65
      %s80 = sphi 0, %s66
      %s84 = sphi 0, %s84
      %s86 = sphi 0, %s84
      %s87 = sphi 0, %s86
      %s101 = sphi 0, %s87
      %s109 = sphi 0, %s111
      %s112 = sphi 0, %s109
      %s113 = sphi 0, %s112
      %s129 = sphi 0, %s113
    $region4: #{tpu_custom_call.1} parent=1 // loop_header_branch
      %18 = sbr.rel (%p16) target = $region8
    $region5: #{tpu_custom_call.1} parent=1 // loop_body
      %s20 = ssub.s32 %s15, 1
      %s21 = ssub.s32 %s15, 2
      %s28 = sadd.s32 1, %s23
      %p29 = scmp.ge.s32.totalorder %s28, 1
      %s30 = scalar_select %p29, 0, %s28
      %s31 = sadd.s32 1, %s22
      %s32 = scalar_select %p29, %s31, %s22
      %p33 = scmp.ge.s32.totalorder %s32, 2
      %s34 = scalar_select %p33, 0, %s32
      %s35 = ssub.s32 %s22, %s34
      %s36 = ssub.s32 %s23, %s30
      %s37 = sor.u32 %s35, %s36
      %p38 = scmp.eq.s32.totalorder %s37, 0
      %s40 = sadd.s32 %s39, 1
      %s41 = scalar_select %p38, %s39, %s40
      %p44 = pneg %p38
      %p45 = scmp.eq.s32.totalorder %s15, 1
      %p46 = por %p44, %p45
      %p47 = scmp.ne.s32.totalorder %s39, %s42
      %p48 = scmp.eq.s32.totalorder %s15, 0
      %p49 = por %p47, %p48
      %p50 = scmp.ne.s32.totalorder %s39, %s42
      %p51 = scmp.eq.s32.totalorder %s20, 1
      %p52 = por %p50, %p51
      %p53 = scmp.ne.s32.totalorder %s42, %s43
      %p54 = scmp.eq.s32.totalorder %s20, 0
      %p55 = por %p53, %p54
      %p56 = scmp.ne.s32.totalorder %s42, %s43
      %p57 = scmp.eq.s32.totalorder %s21, 1
      %p58 = por %p56, %p57
      %p60 = scmp.ne.s32.totalorder %s43, %s59
      %p61 = scmp.eq.s32.totalorder %s21, 0
      %p62 = por %p60, %p61
      %s64 = sadd.s32 %s63, 1
      %p67 = scmp.eq.s32.totalorder %s15, 1
      %p68 = scmp.ne.s32.totalorder %s63, %s65
      %p69 = scmp.eq.s32.totalorder %s15, 0
      %p70 = por %p68, %p69
      %p71 = scmp.ne.s32.totalorder %s63, %s65
      %p72 = scmp.eq.s32.totalorder %s20, 1
      %p73 = por %p71, %p72
      %p74 = scmp.ne.s32.totalorder %s65, %s66
      %p75 = scmp.eq.s32.totalorder %s20, 0
      %p76 = por %p74, %p75
      %p77 = scmp.ne.s32.totalorder %s65, %s66
      %p78 = scmp.eq.s32.totalorder %s21, 1
      %p79 = por %p77, %p78
      %p81 = scmp.ne.s32.totalorder %s66, %s80
      %p82 = scmp.eq.s32.totalorder %s21, 0
      %p83 = por %p81, %p82
      %s85 = sadd.s32 %s84, 1
      %p88 = scmp.eq.s32.totalorder %s15, 1
      %p89 = scmp.ne.s32.totalorder %s84, %s86
      %p90 = scmp.eq.s32.totalorder %s15, 0
      %p91 = por %p89, %p90
      %p92 = scmp.ne.s32.totalorder %s84, %s86
      %p93 = scmp.eq.s32.totalorder %s20, 1
      %p94 = por %p92, %p93
      %p95 = scmp.ne.s32.totalorder %s86, %s87
      %p96 = scmp.eq.s32.totalorder %s20, 0
      %p97 = por %p95, %p96
      %p98 = scmp.ne.s32.totalorder %s86, %s87
      %p99 = scmp.eq.s32.totalorder %s21, 1
      %p100 = por %p98, %p99
      %p102 = scmp.ne.s32.totalorder %s87, %s101
      %p103 = scmp.eq.s32.totalorder %s21, 0
      %p104 = por %p102, %p103
      %s105 = ssub.s32 %s22, %s34
      %s106 = ssub.s32 %s23, %s30
      %s107 = sor.u32 %s105, %s106
      %p108 = scmp.eq.s32.totalorder %s107, 0
      %s110 = sadd.s32 %s109, 1
      %s111 = scalar_select %p108, %s109, %s110
      %p114 = pneg %p108
      %p115 = scmp.eq.s32.totalorder %s15, 1
      %p116 = por %p114, %p115
      %p117 = scmp.ne.s32.totalorder %s109, %s112
      %p118 = scmp.eq.s32.totalorder %s15, 0
      %p119 = por %p117, %p118
      %p120 = scmp.ne.s32.totalorder %s109, %s112
      %p121 = scmp.eq.s32.totalorder %s20, 1
      %p122 = por %p120, %p121
      %p123 = scmp.ne.s32.totalorder %s112, %s113
      %p124 = scmp.eq.s32.totalorder %s20, 0
      %p125 = por %p123, %p124
      %p126 = scmp.ne.s32.totalorder %s112, %s113
      %p127 = scmp.eq.s32.totalorder %s21, 1
      %p128 = por %p126, %p127
      %p130 = scmp.ne.s32.totalorder %s113, %s129
      %p131 = scmp.eq.s32.totalorder %s21, 0
      %p132 = por %p130, %p131
      %p133 = scmp.le.s32.totalorder 1, %s15
      %p134 = scmp.lt.s32.totalorder %s15, 3
      %p135 = pnand %p133, %p134
      %p136 = pneg %p135
      // Predicated region
      $region9: #{tpu_custom_call.1} parent=5 // pred_check
        _
      $region10: #{tpu_custom_call.1} parent=5 // pred_check_branch
        %138 = sbr.rel (%p135) target = $region12
      $region11: #{tpu_custom_call.1} parent=5 // pred_region
        %s139 = ssub.s32 %s15, 1
        // Predicated region
        $region13: #{tpu_custom_call.1} parent=11 // pred_check
          %p140 = pneg %p76
        $region14: #{tpu_custom_call.1} parent=11 // pred_check_branch
          %142 = sbr.rel (%p140) target = $region16
        $region15: #{tpu_custom_call.1} parent=11 // pred_region
          _
        $region16: #{tpu_custom_call.1} parent=11 // pred_fallthru
          _
        // Predicated region
        $region17: #{tpu_custom_call.1} parent=11 // pred_check
          %p143 = pneg %p97
        $region18: #{tpu_custom_call.1} parent=11 // pred_check_branch
          %145 = sbr.rel (%p143) target = $region20
        $region19: #{tpu_custom_call.1} parent=11 // pred_region
          _
        $region20: #{tpu_custom_call.1} parent=11 // pred_fallthru
          _
      $region12: #{tpu_custom_call.1} parent=5 // pred_fallthru
        _
      %p146 = scmp.lt.s32.totalorder %s15, 2
      // Predicated region
      $region21: #{tpu_custom_call.1} parent=5 // pred_check
        %p147 = pneg %p146
      $region22: #{tpu_custom_call.1} parent=5 // pred_check_branch
        %149 = sbr.rel (%p147) target = $region24
      $region23: #{tpu_custom_call.1} parent=5 // pred_region
        // Predicated region
        $region25: #{tpu_custom_call.1} parent=23 // pred_check
          %p150 = pneg %p49
        $region26: #{tpu_custom_call.1} parent=23 // pred_check_branch
          %152 = sbr.rel (%p150) target = $region28
        $region27: #{tpu_custom_call.1} parent=23 // pred_region
          %s153 = sand.u32 %s39, 1
          %s154 = scalar_lea.sflag [#allocation3], %s153
          %s155 = sand.u32 %s39, 1
          %s156 = smul.addr %s155, 64
          %s157 = scalar_lea.vmem [#allocation2], %s156
          %s158 = smul.u32 2, %s23
          %160 = vsyncadd %s154, 0
          %s161 = smul.addr %s22, 8
          %s162 = sadd.s32 %s158, %s161
          %s163 = smul.addr %s162, 8
          %s164 = scalar_lea.hbm %s0, %s163
          %s165 = sshll.u32 %s164, 4
          %s166 = int_to_ptr.hbm [resolvable:$true] %s165
          %s167 = sshll.u32 %s157, 4
          %s168 = int_to_ptr.vmem [resolvable:$true] %s167
          %173 = dma.hbm_to_vmem [thread:$0]  %s166, 1024, %s168, %s154, 256, 256, 16
        $region28: #{tpu_custom_call.1} parent=23 // pred_fallthru
          _
      $region24: #{tpu_custom_call.1} parent=5 // pred_fallthru
        _
      %p174 = scmp.le.s32.totalorder 1, %s15
      %p175 = scmp.lt.s32.totalorder %s15, 3
      %p176 = pnand %p174, %p175
      %p177 = pneg %p176
      // Predicated region
      $region29: #{tpu_custom_call.1} parent=5 // pred_check
        _
      $region30: #{tpu_custom_call.1} parent=5 // pred_check_branch
        %179 = sbr.rel (%p176) target = $region32
      $region31: #{tpu_custom_call.1} parent=5 // pred_region
        %s180 = ssub.s32 %s15, 1
        %s181 = sand.u32 %s42, 1
        %s182 = scalar_lea.sflag [#allocation3], %s181
        %s183 = sand.u32 %s42, 1
        %s184 = smul.addr %s183, 64
        %s185 = scalar_lea.vmem [#allocation2], %s184
        // Predicated region
        $region33: #{tpu_custom_call.1} parent=31 // pred_check
          %p186 = pneg %p55
        $region34: #{tpu_custom_call.1} parent=31 // pred_check_branch
          %188 = sbr.rel (%p186) target = $region36
        $region35: #{tpu_custom_call.1} parent=31 // pred_region
          %190 = dma.done %s182, 1024
        $region36: #{tpu_custom_call.1} parent=31 // pred_fallthru
          _
        %s191 = sand.u32 %s42, 1
        %s192 = scalar_lea.sflag [#allocation3], %s191
        %s193 = sand.u32 %s42, 1
        %s194 = smul.addr %s193, 64
        %s195 = scalar_lea.vmem [#allocation2], %s194
        %p196 = pneg %p55
        %p197 = pneg %p52
        %p198 = pneg %p76
        %p199 = pneg %p73
        %p200 = pneg %p97
        %p201 = pneg %p94
        %p202 = pneg %p125
        %p203 = pneg %p122
        %s204 = sand.u32 %s112, 1
        %s205 = scalar_lea.sflag [#allocation4], %s204
        %s206 = sand.u32 %s112, 1
        %s207 = smul.addr %s206, 64
        %s208 = scalar_lea.vmem [#allocation5], %s207
        %s209 = smul.u32 2, %s25
        %s210 = smul.u32 2, %s25
        %v211 = vld [vmem:[%s185] sm:$0xff]
        %v212 = vld [vmem:[%s185 + $0x8] sm:$0xff]
        %v213 = vld [vmem:[%s185 + $0x10] sm:$0xff]
        %v214 = vld [vmem:[%s185 + $0x18] sm:$0xff]
        %v215 = vld [vmem:[%s185 + $0x20] sm:$0xff]
        %v216 = vld [vmem:[%s185 + $0x28] sm:$0xff]
        %v217 = vld [vmem:[%s185 + $0x30] sm:$0xff]
        %v218 = vld [vmem:[%s185 + $0x38] sm:$0xff]
        %v219 = vadd.f32 %v211, %v213
        %v220 = vadd.f32 %v219, %v215
        %v221 = vadd.f32 %v220, %v217
        %v222 = vrot.slane %v221, 4
        %v223 = vadd.f32 %v221, %v222
        %v224 = vrot.slane %v223, 2
        %v225 = vadd.f32 %v223, %v224
        %v226 = vrot.slane %v225, 1
        %v227 = vadd.f32 %v225, %v226
        %v228 = vadd.f32 %v212, %v214
        %v229 = vadd.f32 %v228, %v216
        %v230 = vadd.f32 %v229, %v218
        %v231 = vrot.slane %v230, 4
        %v232 = vadd.f32 %v230, %v231
        %v233 = vrot.slane %v232, 2
        %v234 = vadd.f32 %v232, %v233
        %v235 = vrot.slane %v234, 1
        %v236 = vadd.f32 %v234, %v235
        %v237 = vmul.f32 %v227, 0.03125
        %v238 = vmul.f32 %v236, 0.03125
        %v239 = vsub.f32 %v211, %v237
        %v240 = vsub.f32 %v212, %v238
        %v241 = vsub.f32 %v213, %v237
        %v242 = vsub.f32 %v214, %v238
        %v243 = vsub.f32 %v215, %v237
        %v244 = vsub.f32 %v216, %v238
        %v245 = vsub.f32 %v217, %v237
        %v246 = vsub.f32 %v218, %v238
        %v247 = vmul.f32 %v239, %v239
        %v248 = vmul.f32 %v240, %v240
        %v249 = vmul.f32 %v241, %v241
        %v250 = vmul.f32 %v242, %v242
        %v251 = vmul.f32 %v243, %v243
        %v252 = vmul.f32 %v244, %v244
        %v253 = vmul.f32 %v245, %v245
        %v254 = vmul.f32 %v246, %v246
        %v255 = vadd.f32 %v247, %v249
        %v256 = vadd.f32 %v255, %v251
        %v257 = vadd.f32 %v256, %v253
        %v258 = vrot.slane %v257, 4
        %v259 = vadd.f32 %v257, %v258
        %v260 = vrot.slane %v259, 2
        %v261 = vadd.f32 %v259, %v260
        %v262 = vrot.slane %v261, 1
        %v263 = vadd.f32 %v261, %v262
        %v264 = vadd.f32 %v248, %v250
        %v265 = vadd.f32 %v264, %v252
        %v266 = vadd.f32 %v265, %v254
        %v267 = vrot.slane %v266, 4
        %v268 = vadd.f32 %v266, %v267
        %v269 = vrot.slane %v268, 2
        %v270 = vadd.f32 %v268, %v269
        %v271 = vrot.slane %v270, 1
        %v272 = vadd.f32 %v270, %v271
        %v273 = vmul.f32 %v263, 0.03125
        %v274 = vmul.f32 %v272, 0.03125
        %v275 = vadd.f32 %v273, 1e-06
        %v276 = vadd.f32 %v274, 1e-06
        %v277 = vrsqrt.pop %v275
        %v278 = vmul.f32 %v277, %v275
        %v279 = vmul.f32 %v278, %v277
        %v280 = vmul.f32 0.5, %v279
        %v281 = vsub.f32 1.5, %v280
        %v282 = vmul.f32 %v277, %v281
        %vm283 = vweird.f32 %v275
        %vm284 = vweird.f32 %v277
        %vm285 = vmor %vm283, %vm284
        %v286 = vsel %vm285, %v277, %v282
        %v287 = vrsqrt.pop %v276
        %v288 = vmul.f32 %v287, %v276
        %v289 = vmul.f32 %v288, %v287
        %v290 = vmul.f32 0.5, %v289
        %v291 = vsub.f32 1.5, %v290
        %v292 = vmul.f32 %v287, %v291
        %vm293 = vweird.f32 %v276
        %vm294 = vweird.f32 %v287
        %vm295 = vmor %vm293, %vm294
        %v296 = vsel %vm295, %v287, %v292
        %v297 = vmul.f32 %v239, %v286
        %v298 = vmul.f32 %v240, %v296
        %v299 = vmul.f32 %v241, %v286
        %v300 = vmul.f32 %v242, %v296
        %v301 = vmul.f32 %v243, %v286
        %v302 = vmul.f32 %v244, %v296
        %v303 = vmul.f32 %v245, %v286
        %v304 = vmul.f32 %v246, %v296
        %v305 = vld [vmem:[%s1] sm:$0xff]
        %v306 = vld [vmem:[%s1 + $0x8] sm:$0xff]
        %v307 = vld [vmem:[%s1 + $0x10] sm:$0xff]
        %v308 = vld [vmem:[%s1 + $0x18] sm:$0xff]
        %310 = vset.pattern.permute.xlu0 0
        %311 = vperm.xlu0 %310, %v305
        %v312 = vpop.permute.xlu0 %311
        %315 = vset.pattern.permute.xlu0 0
        %316 = vperm.xlu0 %315, %v306
        %v317 = vpop.permute.xlu0 %316
        %320 = vset.pattern.permute.xlu0 0
        %321 = vperm.xlu0 %320, %v307
        %v322 = vpop.permute.xlu0 %321
        %325 = vset.pattern.permute.xlu0 0
        %326 = vperm.xlu0 %325, %v308
        %v327 = vpop.permute.xlu0 %326
        %v329 = vmul.f32 %v297, %v312
        %v330 = vmul.f32 %v298, %v312
        %v331 = vmul.f32 %v299, %v317
        %v332 = vmul.f32 %v300, %v317
        %v333 = vmul.f32 %v301, %v322
        %v334 = vmul.f32 %v302, %v322
        %v335 = vmul.f32 %v303, %v327
        %v336 = vmul.f32 %v304, %v327
        %v337 = vld [vmem:[%s2] sm:$0xff]
        %v338 = vld [vmem:[%s2 + $0x8] sm:$0xff]
        %v339 = vld [vmem:[%s2 + $0x10] sm:$0xff]
        %v340 = vld [vmem:[%s2 + $0x18] sm:$0xff]
        %342 = vset.pattern.permute.xlu0 0
        %343 = vperm.xlu0 %342, %v337
        %v344 = vpop.permute.xlu0 %343
        %347 = vset.pattern.permute.xlu0 0
        %348 = vperm.xlu0 %347, %v338
        %v349 = vpop.permute.xlu0 %348
        %352 = vset.pattern.permute.xlu0 0
        %353 = vperm.xlu0 %352, %v339
        %v354 = vpop.permute.xlu0 %353
        %357 = vset.pattern.permute.xlu0 0
        %358 = vperm.xlu0 %357, %v340
        %v359 = vpop.permute.xlu0 %358
        %v361 = vadd.f32 %v329, %v344
        %v362 = vadd.f32 %v330, %v344
        %v363 = vadd.f32 %v331, %v349
        %v364 = vadd.f32 %v332, %v349
        %v365 = vadd.f32 %v333, %v354
        %v366 = vadd.f32 %v334, %v354
        %v367 = vadd.f32 %v335, %v359
        %v368 = vadd.f32 %v336, %v359
        %369 = vst [vmem:[%s208] sm:$0xff] %v361
        %370 = vst [vmem:[%s208 + $0x8] sm:$0xff] %v362
        %371 = vst [vmem:[%s208 + $0x10] sm:$0xff] %v363
        %372 = vst [vmem:[%s208 + $0x18] sm:$0xff] %v364
        %373 = vst [vmem:[%s208 + $0x20] sm:$0xff] %v365
        %374 = vst [vmem:[%s208 + $0x28] sm:$0xff] %v366
        %375 = vst [vmem:[%s208 + $0x30] sm:$0xff] %v367
        %376 = vst [vmem:[%s208 + $0x38] sm:$0xff] %v368
        %s377 = sand.u32 %s112, 1
        %s378 = scalar_lea.sflag [#allocation4], %s377
        %s379 = sand.u32 %s112, 1
        %s380 = smul.addr %s379, 64
        %s381 = scalar_lea.vmem [#allocation5], %s380
        // Predicated region
        $region37: #{tpu_custom_call.1} parent=31 // pred_check
          %p382 = pneg %p122
        $region38: #{tpu_custom_call.1} parent=31 // pred_check_branch
          %384 = sbr.rel (%p382) target = $region40
        $region39: #{tpu_custom_call.1} parent=31 // pred_region
          %s385 = smul.u32 2, %s25
          %387 = vsyncadd %s378, 0
          %s388 = smul.addr %s24, 8
          %s389 = sadd.s32 %s385, %s388
          %s390 = smul.addr %s389, 8
          %s391 = scalar_lea.hbm %s3, %s390
          %s392 = sshll.u32 %s381, 4
          %s393 = int_to_ptr.vmem [resolvable:$true] %s392
          %s394 = sshll.u32 %s391, 4
          %s395 = int_to_ptr.hbm [resolvable:$true] %s394
          %400 = dma.vmem_to_hbm [thread:$0]  %s393, 1024, %s395, %s378, 256, 256, 16
        $region40: #{tpu_custom_call.1} parent=31 // pred_fallthru
          _
      $region32: #{tpu_custom_call.1} parent=5 // pred_fallthru
        _
      %p401 = scmp.le.s32.totalorder 2, %s15
      // Predicated region
      $region41: #{tpu_custom_call.1} parent=5 // pred_check
        %p402 = pneg %p401
      $region42: #{tpu_custom_call.1} parent=5 // pred_check_branch
        %404 = sbr.rel (%p402) target = $region44
      $region43: #{tpu_custom_call.1} parent=5 // pred_region
        %s405 = ssub.s32 %s15, 2
        // Predicated region
        $region45: #{tpu_custom_call.1} parent=43 // pred_check
          %p406 = pneg %p128
        $region46: #{tpu_custom_call.1} parent=43 // pred_check_branch
          %408 = sbr.rel (%p406) target = $region48
        $region47: #{tpu_custom_call.1} parent=43 // pred_region
          %s409 = sand.u32 %s113, 1
          %s410 = scalar_lea.sflag [#allocation4], %s409
          %s411 = sand.u32 %s113, 1
          %s412 = smul.addr %s411, 64
          %s413 = scalar_lea.vmem [#allocation5], %s412
          %415 = dma.done %s410, 1024
        $region48: #{tpu_custom_call.1} parent=43 // pred_fallthru
          _
      $region44: #{tpu_custom_call.1} parent=5 // pred_fallthru
        _
    $region6: #{tpu_custom_call.1} parent=1 // loop_footer
      %s19 = sadd.s32 1, %s15
    $region7: #{tpu_custom_call.1} parent=1 // loop_footer_branch
      %14 = sbr.rel target = $region3
    $region8: #{tpu_custom_call.1} parent=1 // loop_exit
      _
    %416 = vsyncpa [#allocation3], 1
    %s417 = scalar_lea.sflag [#allocation3], 1
    %418 = vsyncpa %s417, 1
    %419 = vsyncpa [#allocation4], 1
    %s420 = scalar_lea.sflag [#allocation4], 1
    %421 = vsyncpa %s420, 1

</llo_original>
